<compile_context>
chip_gen: v5e
topology: v5e:2x2
jax: 0.10.0
libtpu: 0.0.40
codegen_flags: <defaults>
</compile_context>

<pallas_src>
import jax
import jax.numpy as jnp
from jax import lax
from jax.experimental import pallas as pl
from jax.experimental.pallas import tpu as pltpu

FREQ_MASK_PARAM = 30
TIME_MASK_PARAM = 80

_SUBLANE = 8
_LANE = 128
_TARGET_BLOCK_BYTES = 2 * 1024 * 1024  # ~2 MiB/block; 4 double-buffered copies
                                       # (in+out) = 8 MiB < 16 MiB (v5e default)


def _round_up(x, m):
    return (x + m - 1) // m * m


def _pick_batch_tile(batch, per_item_bytes):
    """Largest divisor of `batch` whose block stays <= the target bytes, while
    keeping >= 2 grid steps so megacore (v7x: 2 TCs) can shard the batch."""
    bt = 1
    for cand in range(1, batch + 1):
        if batch % cand == 0 and cand * per_item_bytes <= _TARGET_BLOCK_BYTES:
            bt = cand
    if batch >= 2 and bt == batch:
        for cand in range(batch // 2, 0, -1):
            if batch % cand == 0:
                bt = cand
                break
    return bt


def _mask_kernel(params_ref, x_ref, o_ref):
    # params_ref (SMEM, int32, (4,)): [f0, f_width, t0, t_width].
    # The apply gates are pre-folded into the widths (width == 0 => no mask).
    f0 = params_ref[0]
    fw = params_ref[1]
    t0 = params_ref[2]
    tw = params_ref[3]

    _, F, T = x_ref.shape
    # Row / column shaped masks: the range tests run on tiny (F,1)/(1,T)
    # vectors, so their cost is negligible; the per-element hot path is just
    # the single select below.
    f_idx = lax.broadcasted_iota(jnp.int32, (F, 1), 0)
    t_idx = lax.broadcasted_iota(jnp.int32, (1, T), 1)
    freq_mask = (f_idx >= f0) & (f_idx < f0 + fw)      # (F, 1)
    time_mask = (t_idx >= t0) & (t_idx < t0 + tw)      # (1, T)
    mask = freq_mask | time_mask                       # (F, T), shared by all
                                                       # batch rows in the block
    x = x_ref[...]                                     # (Bt, F, T)
    o_ref[...] = jnp.where(mask[None, :, :], 0.0, x).astype(o_ref.dtype)


def _masked_call(spec, params):
    B, F, T = spec.shape
    Fp = _round_up(F, _SUBLANE)
    Tp = _round_up(T, _LANE)          # lane-dense last dim -> unmasked stores
    padded = (Fp != F) or (Tp != T)
    x = jnp.pad(spec, ((0, 0), (0, Fp - F), (0, Tp - T))) if padded else spec

    bt = _pick_batch_tile(B, Fp * Tp * x.dtype.itemsize)

    out = pl.pallas_call(
        _mask_kernel,
        out_shape=jax.ShapeDtypeStruct((B, Fp, Tp), x.dtype),
        grid_spec=pltpu.PrefetchScalarGridSpec(
            num_scalar_prefetch=1,
            grid=(B // bt,),
            in_specs=[pl.BlockSpec((bt, Fp, Tp), lambda b, p: (b, 0, 0))],
            out_specs=pl.BlockSpec((bt, Fp, Tp), lambda b, p: (b, 0, 0)),
        ),
        compiler_params=pltpu.CompilerParams(
            dimension_semantics=("parallel",)),
        # Input index 1 is the spectrogram (index 0 is the scalar-prefetch
        # params): alias it to the output — pure in-place mask, no extra alloc.
        input_output_aliases={1: 0},
    )(params, x)

    return out[:, :F, :T] if padded else out


def augment_pallas(spec, params, apply_any):
    """spec: (B, F, T) float32; params: (4,) int32 [f0, fw, t0, tw] (gated
    widths); apply_any: the module's first coin flip. When it is False the
    kernel is skipped entirely and spec is returned unchanged."""
    # TODO(synk): the PyTorch forward implicitly returns None when the first
    # coin flip fails; here we return the spectrogram unchanged instead.
    return lax.cond(apply_any,
                    lambda s: _masked_call(s, params),
                    lambda s: s,
                    spec)


def draw_mask_params(key, F, T):
    """Reproduce torchaudio mask_along_axis parameter sampling + the module's
    probabilistic gating, in plain JAX (glue). Gates are folded into widths."""
    k_gate1, k_fw, k_f0, k_gate2, k_tw, k_t0 = jax.random.split(key, 6)

    gate1 = jax.random.uniform(k_gate1, ()) < 0.5      # apply freq mask?
    gate2 = jax.random.uniform(k_gate2, ()) < 0.5      # apply time mask?

    # FrequencyMasking: value ~ U(0,30), min ~ U(0, F - value);
    # torchaudio: start = floor(min), end = floor(min) + floor(value).
    f_val = jax.random.uniform(k_fw, ()) * FREQ_MASK_PARAM
    f_min = jax.random.uniform(k_f0, ()) * (F - f_val)
    f0 = jnp.floor(f_min).astype(jnp.int32)
    fw = jnp.floor(f_val).astype(jnp.int32)

    # TimeMasking: value ~ U(0,80), min ~ U(0, T - value).
    t_val = jax.random.uniform(k_tw, ()) * TIME_MASK_PARAM
    t_min = jax.random.uniform(k_t0, ()) * (T - t_val)
    t0 = jnp.floor(t_min).astype(jnp.int32)
    tw = jnp.floor(t_val).astype(jnp.int32)

    apply_f = gate1
    apply_t = gate1 & gate2    # time mask only inside the freq-mask branch

    params = jnp.stack([
        f0, fw * apply_f.astype(jnp.int32),
        t0, tw * apply_t.astype(jnp.int32),
    ]).astype(jnp.int32)
    return params, apply_f


def reference(spec, params, apply_any):
    """Pure-JAX reference of the masking for verification."""
    f0, fw, t0, tw = params[0], params[1], params[2], params[3]
    B, F, T = spec.shape
    f_idx = jnp.arange(F)[None, :, None]
    t_idx = jnp.arange(T)[None, None, :]
    fm = (f_idx >= f0) & (f_idx < f0 + fw)
    tm = (t_idx >= t0) & (t_idx < t0 + tw)
    masked = jnp.where(fm | tm, 0.0, spec)
    return jnp.where(apply_any, masked, spec)


if __name__ == "__main__":
    key = jax.random.PRNGKey(0)
    k_spec, k_aug = jax.random.split(key)

    B, F, T = 2, 64, 128
    spec = jax.random.normal(k_spec, (B, F, T), dtype=jnp.float32)

    params, apply_any = draw_mask_params(k_aug, F, T)

    aug = jax.jit(augment_pallas)

    out = jax.block_until_ready(aug(spec, params, apply_any))
    ref = reference(spec, params, apply_any)
    assert out.shape == spec.shape and out.dtype == spec.dtype
    assert jnp.allclose(out, ref), "mismatch vs reference (sampled params)"

    # Also exercise the masked path deterministically (both masks forced on)
    # so the kernel itself — not just the pass-through branch — is verified.
    forced = jnp.array([5, 17, 40, 33], dtype=jnp.int32)
    out_f = jax.block_until_ready(aug(spec, forced, jnp.bool_(True)))
    ref_f = reference(spec, forced, jnp.bool_(True))
    assert jnp.allclose(out_f, ref_f), "mismatch vs reference (forced masks)"

    print("KERNEL_OK")
</pallas_src>

<mosaic_0001>
module attributes {stable_mosaic.version = 11 : i64} {
  func.func @_mask_kernel(%arg0: i32, %arg1: memref<4xi32, #tpu.memory_space<smem>>, %arg2: memref<1x64x128xf32, #tpu.memory_space<vmem>>, %arg3: memref<1x64x128xf32, #tpu.memory_space<vmem>>) attributes {dimension_semantics = [#tpu.dimension_semantics<parallel>], iteration_bounds = array<i64: 2>, scalar_prefetch = 1 : i64, scratch_operands = 0 : i64, tpu.core_type = #tpu.core_type<tc>, window_params = [{transform_indices = @transform_0, window_bounds = array<i64: 1, 64, 128>}, {transform_indices = @transform_1, window_bounds = array<i64: 1, 64, 128>}]} {
    %c0 = arith.constant 0 : index
    %0 = memref.load %arg1[%c0] : memref<4xi32, #tpu.memory_space<smem>>
    %c1 = arith.constant 1 : index
    %1 = memref.load %arg1[%c1] : memref<4xi32, #tpu.memory_space<smem>>
    %c2 = arith.constant 2 : index
    %2 = memref.load %arg1[%c2] : memref<4xi32, #tpu.memory_space<smem>>
    %c3 = arith.constant 3 : index
    %3 = memref.load %arg1[%c3] : memref<4xi32, #tpu.memory_space<smem>>
    %4 = tpu.iota {dimensions = array<i32: 0>} : vector<64x1xi32>
    %5 = tpu.iota {dimensions = array<i32: 1>} : vector<1x128xi32>
    %6 = vector.broadcast %0 : i32 to vector<64x1xi32>
    %7 = arith.cmpi sge, %4, %6 : vector<64x1xi32>
    %8 = arith.addi %0, %1 : i32
    %9 = vector.broadcast %8 : i32 to vector<64x1xi32>
    %10 = arith.cmpi slt, %4, %9 : vector<64x1xi32>
    %11 = arith.andi %7, %10 : vector<64x1xi1>
    %12 = vector.broadcast %2 : i32 to vector<1x128xi32>
    %13 = arith.cmpi sge, %5, %12 : vector<1x128xi32>
    %14 = arith.addi %2, %3 : i32
    %15 = vector.broadcast %14 : i32 to vector<1x128xi32>
    %16 = arith.cmpi slt, %5, %15 : vector<1x128xi32>
    %17 = arith.andi %13, %16 : vector<1x128xi1>
    %18 = vector.broadcast %11 : vector<64x1xi1> to vector<64x128xi1>
    %19 = vector.broadcast %17 : vector<1x128xi1> to vector<64x128xi1>
    %20 = arith.ori %18, %19 : vector<64x128xi1>
    %c0_0 = arith.constant 0 : index
    %c0_1 = arith.constant 0 : index
    %c0_2 = arith.constant 0 : index
    %21 = vector.load %arg2[%c0_0, %c0_1, %c0_2] : memref<1x64x128xf32, #tpu.memory_space<vmem>>, vector<1x64x128xf32>
    %22 = vector.shape_cast %20 : vector<64x128xi1> to vector<1x64x128xi1>
    %cst = arith.constant 0.000000e+00 : f32
    %23 = vector.broadcast %cst : f32 to vector<1x64x128xf32>
    %24 = arith.select %22, %23, %21 : vector<1x64x128xi1>, vector<1x64x128xf32>
    %c0_3 = arith.constant 0 : index
    %c0_4 = arith.constant 0 : index
    %c0_5 = arith.constant 0 : index
    %25 = vector.load %arg3[%c0_3, %c0_4, %c0_5] : memref<1x64x128xf32, #tpu.memory_space<vmem>>, vector<1x64x128xf32>
    tpu.vector_store %arg3[%c0_3, %c0_4, %c0_5], %24 {strides = array<i32>} : memref<1x64x128xf32, #tpu.memory_space<vmem>>, vector<1x64x128xf32>,
    return
  }
  func.func @transform_0(%arg0: i32, %arg1: memref<4xi32, #tpu.memory_space<smem>>) -> (i32, i32, i32) {
    %c0_i32 = arith.constant 0 : i32
    %c0_i32_0 = arith.constant 0 : i32
    %c0_i32_1 = arith.constant 0 : i32
    return %arg0, %c0_i32, %c0_i32_0 : i32, i32, i32
  }
  func.func @transform_1(%arg0: i32, %arg1: memref<4xi32, #tpu.memory_space<smem>>) -> (i32, i32, i32) {
    %c0_i32 = arith.constant 0 : i32
    %c0_i32_0 = arith.constant 0 : i32
    %c0_i32_1 = arith.constant 0 : i32
    return %arg0, %c0_i32, %c0_i32_0 : i32, i32, i32
  }
}

</mosaic_0001>

<llo_original>
// kernel: branch_1_fun.1
$region0: #{branch_1_fun.1}
  #allocation0 [shape = 'u32[]', space=smem, size = 0x4, offset = 0x4, fixed_abs, tag = 'smem constant byte address 0x4 - core index']
  #allocation1 [shape = 'u32[72,128]{1,0:T(1,128)}', space=vmem, size = 0x9000, scoped, tag = 'internal scratch']
  #allocation2 [shape = 's32[1]{0}', space=sflag, size = 0x4, scoped, tag = 'scoped memory for branch_1_fun.1']
  #allocation3 [shape = 'u8[512]{0}', space=smem, size = 0x200, scoped, tag = 'prefetched SMEM operand 0']
  %s0 = inlined_call_operand.vmem [shape: s32[4], index: 0, kind: input, shape index: {}]
  %s1 = inlined_call_operand.hbm [shape: f32[2,64,128], index: 1, kind: input, shape index: {}, may-alias: {1,2}]
  %s2 = inlined_call_operand.hbm [shape: f32[2,64,128], index: 2, kind: output, shape index: {}, may-alias: {1,2}]
  %s3 = sld [smem:[#allocation0]]
  $region41: #{branch_1_fun.1} parent=0
    _
  %s5 = ssub.s32 1, %s3
  %s6 = scalar_select 0, %s5, %s3
  %s8 = sshll.u32 %s0, 4
  %s9 = int_to_ptr.vmem [resolvable:$true] %s8
  %11 = dma.vmem_to_smem %s9, 16, [#allocation3], [#allocation2]
  %13 = dma.done [#allocation2], 16
  %14 = sfence
  $region1: #{branch_1_fun.1} parent=0
    #allocation4 [shape = 'u8[65536]{0}', space=vmem, size = 0x10000, scoped, tag = 'input window, operand 1']
    #allocation5 [shape = 's32[2]{0}', space=sflag, size = 0x8, scoped, tag = 'scoped memory for branch_1_fun.1']
    #allocation6 [shape = 's32[2]{0}', space=sflag, size = 0x8, scoped, tag = 'scoped memory for branch_1_fun.1']
    #allocation7 [shape = 'u8[65536]{0}', space=vmem, size = 0x10000, scoped, tag = 'output window, operand 0']
    %15 = vsyncpa [#allocation5], 0
    %s16 = scalar_lea.sflag [#allocation5], 1
    %17 = vsyncpa %s16, 0
    %18 = vsyncpa [#allocation6], 0
    %s19 = scalar_lea.sflag [#allocation6], 1
    %20 = vsyncpa %s19, 0
    loop: start=0, step=1, limit=4
    $region2: #{branch_1_fun.1} parent=1 // loop_pre_header
      _
    $region3: #{branch_1_fun.1} parent=1 // loop_header
      %s22 = sphi 0, %s26
      %p23 = scmp.ge.s32.totalorder %s22, 4
      %s32 = sphi 0, %s34
      %s35 = sphi 0, %s32
      %s36 = sphi 0, %s35
      %s52 = sphi 0, %s36
      %s58 = sphi 0, %s60
      %s61 = sphi 0, %s58
      %s62 = sphi 0, %s61
      %s78 = sphi 0, %s62
    $region4: #{branch_1_fun.1} parent=1 // loop_header_branch
      %25 = sbr.rel (%p23) target = $region8
    $region5: #{branch_1_fun.1} parent=1 // loop_body
      %s27 = ssub.s32 %s22, 1
      %s28 = ssub.s32 %s22, 2
      %s29 = sadd.s32 %s22, 1
      %s30 = ssub.s32 %s22, %s29
      %p31 = scmp.eq.s32.totalorder %s30, 0
      %s33 = sadd.s32 %s32, 1
      %s34 = scalar_select %p31, %s32, %s33
      %p37 = pneg %p31
      %p38 = scmp.eq.s32.totalorder %s22, 1
      %p39 = por %p37, %p38
      %p40 = scmp.ne.s32.totalorder %s32, %s35
      %p41 = scmp.eq.s32.totalorder %s22, 0
      %p42 = por %p40, %p41
      %p43 = scmp.ne.s32.totalorder %s32, %s35
      %p44 = scmp.eq.s32.totalorder %s27, 1
      %p45 = por %p43, %p44
      %p46 = scmp.ne.s32.totalorder %s35, %s36
      %p47 = scmp.eq.s32.totalorder %s27, 0
      %p48 = por %p46, %p47
      %p49 = scmp.ne.s32.totalorder %s35, %s36
      %p50 = scmp.eq.s32.totalorder %s28, 1
      %p51 = por %p49, %p50
      %p53 = scmp.ne.s32.totalorder %s36, %s52
      %p54 = scmp.eq.s32.totalorder %s28, 0
      %p55 = por %p53, %p54
      %s56 = ssub.s32 %s22, %s29
      %p57 = scmp.eq.s32.totalorder %s56, 0
      %s59 = sadd.s32 %s58, 1
      %s60 = scalar_select %p57, %s58, %s59
      %p63 = pneg %p57
      %p64 = scmp.eq.s32.totalorder %s22, 1
      %p65 = por %p63, %p64
      %p66 = scmp.ne.s32.totalorder %s58, %s61
      %p67 = scmp.eq.s32.totalorder %s22, 0
      %p68 = por %p66, %p67
      %p69 = scmp.ne.s32.totalorder %s58, %s61
      %p70 = scmp.eq.s32.totalorder %s27, 1
      %p71 = por %p69, %p70
      %p72 = scmp.ne.s32.totalorder %s61, %s62
      %p73 = scmp.eq.s32.totalorder %s27, 0
      %p74 = por %p72, %p73
      %p75 = scmp.ne.s32.totalorder %s61, %s62
      %p76 = scmp.eq.s32.totalorder %s28, 1
      %p77 = por %p75, %p76
      %p79 = scmp.ne.s32.totalorder %s62, %s78
      %p80 = scmp.eq.s32.totalorder %s28, 0
      %p81 = por %p79, %p80
      %p82 = scmp.le.s32.totalorder 1, %s22
      %p83 = scmp.lt.s32.totalorder %s22, 3
      %p84 = pnand %p82, %p83
      %p85 = pneg %p84
      // Predicated region
      $region9: #{branch_1_fun.1} parent=5 // pred_check
        _
      $region10: #{branch_1_fun.1} parent=5 // pred_check_branch
        %87 = sbr.rel (%p84) target = $region12
      $region11: #{branch_1_fun.1} parent=5 // pred_region
        %s88 = ssub.s32 %s22, 1
      $region12: #{branch_1_fun.1} parent=5 // pred_fallthru
        _
      %p89 = scmp.lt.s32.totalorder %s22, 2
      // Predicated region
      $region13: #{branch_1_fun.1} parent=5 // pred_check
        %p90 = pneg %p89
      $region14: #{branch_1_fun.1} parent=5 // pred_check_branch
        %92 = sbr.rel (%p90) target = $region16
      $region15: #{branch_1_fun.1} parent=5 // pred_region
        // Predicated region
        $region17: #{branch_1_fun.1} parent=15 // pred_check
          %p93 = pneg %p42
        $region18: #{branch_1_fun.1} parent=15 // pred_check_branch
          %95 = sbr.rel (%p93) target = $region20
        $region19: #{branch_1_fun.1} parent=15 // pred_region
          %s96 = sand.u32 %s32, 1
          %s97 = scalar_lea.sflag [#allocation5], %s96
          %s98 = sand.u32 %s32, 1
          %s99 = smul.addr %s98, 64
          %s100 = scalar_lea.vmem [#allocation4], %s99
          %102 = vsyncadd %s97, 0
          %s103 = smul.addr %s22, 8
          %s104 = smul.addr %s103, 8
          %s105 = scalar_lea.hbm %s1, %s104
          %s106 = sshll.u32 %s105, 4
          %s107 = int_to_ptr.hbm [resolvable:$true] %s106
          %s108 = sshll.u32 %s100, 4
          %s109 = int_to_ptr.vmem [resolvable:$true] %s108
          %114 = dma.hbm_to_vmem [thread:$0]  %s107, 1024, %s109, %s97, 128, 128, 8
        $region20: #{branch_1_fun.1} parent=15 // pred_fallthru
          _
      $region16: #{branch_1_fun.1} parent=5 // pred_fallthru
        _
      %p115 = scmp.le.s32.totalorder 1, %s22
      %p116 = scmp.lt.s32.totalorder %s22, 3
      %p117 = pnand %p115, %p116
      %p118 = pneg %p117
      // Predicated region
      $region21: #{branch_1_fun.1} parent=5 // pred_check
        _
      $region22: #{branch_1_fun.1} parent=5 // pred_check_branch
        %120 = sbr.rel (%p117) target = $region24
      $region23: #{branch_1_fun.1} parent=5 // pred_region
        %s121 = ssub.s32 %s22, 1
        %s122 = sand.u32 %s35, 1
        %s123 = scalar_lea.sflag [#allocation5], %s122
        %s124 = sand.u32 %s35, 1
        %s125 = smul.addr %s124, 64
        %s126 = scalar_lea.vmem [#allocation4], %s125
        // Predicated region
        $region25: #{branch_1_fun.1} parent=23 // pred_check
          %p127 = pneg %p48
        $region26: #{branch_1_fun.1} parent=23 // pred_check_branch
          %129 = sbr.rel (%p127) target = $region28
        $region27: #{branch_1_fun.1} parent=23 // pred_region
          %131 = dma.done %s123, 1024
        $region28: #{branch_1_fun.1} parent=23 // pred_fallthru
          _
        %s132 = sand.u32 %s35, 1
        %s133 = scalar_lea.sflag [#allocation5], %s132
        %s134 = sand.u32 %s35, 1
        %s135 = smul.addr %s134, 64
        %s136 = scalar_lea.vmem [#allocation4], %s135
        %p137 = pneg %p48
        %p138 = pneg %p45
        %p139 = pneg %p74
        %p140 = pneg %p71
        %s141 = sand.u32 %s61, 1
        %s142 = scalar_lea.sflag [#allocation6], %s141
        %s143 = sand.u32 %s61, 1
        %s144 = smul.addr %s143, 64
        %s145 = scalar_lea.vmem [#allocation7], %s144
        %s146 = sld [smem:[#allocation3]]
        %s147 = sld [smem:[#allocation3 + $0x1]]
        %s148 = sld [smem:[#allocation3 + $0x2]]
        %s149 = sld [smem:[#allocation3 + $0x3]]
        %v150 = vlaneseq
        %v151 = vshrl.u32 %v150, 7
        %v152 = vadd.s32 %v151, 8
        %v153 = vadd.s32 %v151, 16
        %v154 = vadd.s32 %v151, 24
        %v155 = vadd.s32 %v151, 32
        %v156 = vadd.s32 %v151, 40
        %v157 = vadd.s32 %v151, 48
        %v158 = vadd.s32 %v151, 56
        %v159 = vlaneseq
        %v160 = vand.u32 %v159, 127
        %v161 = vstv %s146
        %vm162 = vcmp.ge.s32.totalorder %v151, %v161
        %vm163 = vcmp.ge.s32.totalorder %v152, %v161
        %vm164 = vcmp.ge.s32.totalorder %v153, %v161
        %vm165 = vcmp.ge.s32.totalorder %v154, %v161
        %vm166 = vcmp.ge.s32.totalorder %v155, %v161
        %vm167 = vcmp.ge.s32.totalorder %v156, %v161
        %vm168 = vcmp.ge.s32.totalorder %v157, %v161
        %vm169 = vcmp.ge.s32.totalorder %v158, %v161
        %s170 = sadd.s32 %s146, %s147
        %v171 = vstv %s170
        %vm172 = vcmp.lt.s32.totalorder %v151, %v171
        %vm173 = vcmp.lt.s32.totalorder %v152, %v171
        %vm174 = vcmp.lt.s32.totalorder %v153, %v171
        %vm175 = vcmp.lt.s32.totalorder %v154, %v171
        %vm176 = vcmp.lt.s32.totalorder %v155, %v171
        %vm177 = vcmp.lt.s32.totalorder %v156, %v171
        %vm178 = vcmp.lt.s32.totalorder %v157, %v171
        %vm179 = vcmp.lt.s32.totalorder %v158, %v171
        %vm180 = vmand %vm162, %vm172
        %vm181 = vmand %vm163, %vm173
        %vm182 = vmand %vm164, %vm174
        %vm183 = vmand %vm165, %vm175
        %vm184 = vmand %vm166, %vm176
        %vm185 = vmand %vm167, %vm177
        %vm186 = vmand %vm168, %vm178
        %vm187 = vmand %vm169, %vm179
        %v188 = vstv %s148
        %vm189 = vcmp.ge.s32.totalorder %v160, %v188
        %s190 = sadd.s32 %s148, %s149
        %v191 = vstv %s190
        %vm192 = vcmp.lt.s32.totalorder %v160, %v191
        %vm193 = vmand %vm189, %vm192
        %v194 = vsel %vm180, 1, 0
        %v195 = vsel %vm181, 1, 0
        %v196 = vsel %vm182, 1, 0
        %v197 = vsel %vm183, 1, 0
        %v198 = vsel %vm184, 1, 0
        %v199 = vsel %vm185, 1, 0
        %v200 = vsel %vm186, 1, 0
        %v201 = vsel %vm187, 1, 0
        %vm202 = vcmp.eq.s32.totalorder %v194, 1
        %vm203 = vcmp.eq.s32.totalorder %v195, 1
        %vm204 = vcmp.eq.s32.totalorder %v196, 1
        %vm205 = vcmp.eq.s32.totalorder %v197, 1
        %vm206 = vcmp.eq.s32.totalorder %v198, 1
        %vm207 = vcmp.eq.s32.totalorder %v199, 1
        %vm208 = vcmp.eq.s32.totalorder %v200, 1
        %vm209 = vcmp.eq.s32.totalorder %v201, 1
        %v210 = vsel %vm193, 1, 0
        %vm211 = vcmp.eq.s32.totalorder %v210, 1
        %vm212 = vmor %vm202, %vm211
        %vm213 = vmor %vm203, %vm211
        %vm214 = vmor %vm204, %vm211
        %vm215 = vmor %vm205, %vm211
        %vm216 = vmor %vm206, %vm211
        %vm217 = vmor %vm207, %vm211
        %vm218 = vmor %vm208, %vm211
        %vm219 = vmor %vm209, %vm211
        %v220 = vld [vmem:[%s126] sm:$0xff]
        %v221 = vld [vmem:[%s126 + $0x8] sm:$0xff]
        %v222 = vld [vmem:[%s126 + $0x10] sm:$0xff]
        %v223 = vld [vmem:[%s126 + $0x18] sm:$0xff]
        %v224 = vld [vmem:[%s126 + $0x20] sm:$0xff]
        %v225 = vld [vmem:[%s126 + $0x28] sm:$0xff]
        %v226 = vld [vmem:[%s126 + $0x30] sm:$0xff]
        %v227 = vld [vmem:[%s126 + $0x38] sm:$0xff]
        %v228 = vsel %vm212, 0.0, %v220
        %v229 = vsel %vm213, 0.0, %v221
        %v230 = vsel %vm214, 0.0, %v222
        %v231 = vsel %vm215, 0.0, %v223
        %v232 = vsel %vm216, 0.0, %v224
        %v233 = vsel %vm217, 0.0, %v225
        %v234 = vsel %vm218, 0.0, %v226
        %v235 = vsel %vm219, 0.0, %v227
        %236 = vst [vmem:[%s145] sm:$0xff] %v228
        %237 = vst [vmem:[%s145 + $0x8] sm:$0xff] %v229
        %238 = vst [vmem:[%s145 + $0x10] sm:$0xff] %v230
        %239 = vst [vmem:[%s145 + $0x18] sm:$0xff] %v231
        %240 = vst [vmem:[%s145 + $0x20] sm:$0xff] %v232
        %241 = vst [vmem:[%s145 + $0x28] sm:$0xff] %v233
        %242 = vst [vmem:[%s145 + $0x30] sm:$0xff] %v234
        %243 = vst [vmem:[%s145 + $0x38] sm:$0xff] %v235
        %s244 = sand.u32 %s61, 1
        %s245 = scalar_lea.sflag [#allocation6], %s244
        %s246 = sand.u32 %s61, 1
        %s247 = smul.addr %s246, 64
        %s248 = scalar_lea.vmem [#allocation7], %s247
        // Predicated region
        $region29: #{branch_1_fun.1} parent=23 // pred_check
          %p249 = pneg %p71
        $region30: #{branch_1_fun.1} parent=23 // pred_check_branch
          %251 = sbr.rel (%p249) target = $region32
        $region31: #{branch_1_fun.1} parent=23 // pred_region
          %253 = vsyncadd %s245, 0
          %s254 = smul.addr %s27, 8
          %s255 = smul.addr %s254, 8
          %s256 = scalar_lea.hbm %s2, %s255
          %s257 = sshll.u32 %s248, 4
          %s258 = int_to_ptr.vmem [resolvable:$true] %s257
          %s259 = sshll.u32 %s256, 4
          %s260 = int_to_ptr.hbm [resolvable:$true] %s259
          %265 = dma.vmem_to_hbm [thread:$0]  %s258, 1024, %s260, %s245, 128, 128, 8
        $region32: #{branch_1_fun.1} parent=23 // pred_fallthru
          _
      $region24: #{branch_1_fun.1} parent=5 // pred_fallthru
        _
      %p266 = scmp.le.s32.totalorder 2, %s22
      // Predicated region
      $region33: #{branch_1_fun.1} parent=5 // pred_check
        %p267 = pneg %p266
      $region34: #{branch_1_fun.1} parent=5 // pred_check_branch
        %269 = sbr.rel (%p267) target = $region36
      $region35: #{branch_1_fun.1} parent=5 // pred_region
        %s270 = ssub.s32 %s22, 2
        // Predicated region
        $region37: #{branch_1_fun.1} parent=35 // pred_check
          %p271 = pneg %p77
        $region38: #{branch_1_fun.1} parent=35 // pred_check_branch
          %273 = sbr.rel (%p271) target = $region40
        $region39: #{branch_1_fun.1} parent=35 // pred_region
          %s274 = sand.u32 %s62, 1
          %s275 = scalar_lea.sflag [#allocation6], %s274
          %s276 = sand.u32 %s62, 1
          %s277 = smul.addr %s276, 64
          %s278 = scalar_lea.vmem [#allocation7], %s277
          %280 = dma.done %s275, 1024
        $region40: #{branch_1_fun.1} parent=35 // pred_fallthru
          _
      $region36: #{branch_1_fun.1} parent=5 // pred_fallthru
        _
    $region6: #{branch_1_fun.1} parent=1 // loop_footer
      %s26 = sadd.s32 1, %s22
    $region7: #{branch_1_fun.1} parent=1 // loop_footer_branch
      %21 = sbr.rel target = $region3
    $region8: #{branch_1_fun.1} parent=1 // loop_exit
      _
    %281 = vsyncpa [#allocation5], 1
    %s282 = scalar_lea.sflag [#allocation5], 1
    %283 = vsyncpa %s282, 1
    %284 = vsyncpa [#allocation6], 1
    %s285 = scalar_lea.sflag [#allocation6], 1
    %286 = vsyncpa %s285, 1

</llo_original>
